<compile_context>
chip_gen: v7x
topology: tpu7x:2x2x1
jax: 0.10.0
libtpu: 0.0.40
codegen_flags: <defaults>
</compile_context>

<pallas_src>
import math
from typing import NamedTuple

import jax
import jax.numpy as jnp
from jax.experimental import pallas as pl
from jax.experimental.pallas import tpu as pltpu

_LANE = 128
_SUBLANE = 8


def _round_up(x, m):
    return (x + m - 1) // m * m


def _cdiv(a, b):
    return -(-a // b)


# --------------------------------------------------------------------------------------
# Kernel
# --------------------------------------------------------------------------------------
def _mlp_head_kernel(x_ref, w1_ref, b1_ref, w2_ref, b2_ref, o_ref):
    """Fused Linear -> Sigmoid -> Linear -> Sigmoid on one batch tile.

    Matmuls: bf16 inputs, f32 accumulation on the MXU.
    Bias add in f32 on the VPU; sigmoid via a single tanh per element on the EUP.
    """
    x = x_ref[...].astype(jnp.bfloat16)                                  # f32->bf16 cast is free-ish VPU work
    h = jnp.dot(x, w1_ref[...], preferred_element_type=jnp.float32)     # [TB, Hp] f32 (MXU)
    h = h + b1_ref[...]                                                  # broadcast [1, Hp]
    h = 0.5 * jnp.tanh(0.5 * h) + 0.5                                    # sigmoid, 1 EUP op/elem
    y = jnp.dot(h.astype(w2_ref.dtype), w2_ref[...],
                preferred_element_type=jnp.float32)                      # [TB, Op] f32 (MXU)
    y = y + b2_ref[...]                                                  # broadcast [1, Op]
    y = 0.5 * jnp.tanh(0.5 * y) + 0.5                                    # sigmoid, 1 EUP op/elem
    o_ref[...] = y.astype(o_ref.dtype)                                   # lane-dense store


# --------------------------------------------------------------------------------------
# Parameter preparation (done ONCE at model init — not on the per-call path)
# --------------------------------------------------------------------------------------
class DAMHeadParams(NamedTuple):
    w1: jax.Array  # [Dp, Hp] bf16, zero-padded
    b1: jax.Array  # [1,  Hp] f32,  zero-padded
    w2: jax.Array  # [Hp, Op] bf16, zero-padded
    b2: jax.Array  # [1,  Op] f32,  zero-padded
    d: int
    h: int
    o: int


def prepare_dam_head_params(w1, b1, w2, b2):
    """Pad weight/bias dims to multiples of 128 (lane-dense) and cast weights to bf16, once.

    Zero padding is numerically exact: padded K columns/rows contribute 0 to the dots, and
    the padded hidden columns (sigmoid(0)=0.5) multiply zero rows of w2.  Keep that invariant.
    """
    D, H = w1.shape
    O = w2.shape[1]
    Dp, Hp, Op = _round_up(D, _LANE), _round_up(H, _LANE), _round_up(O, _LANE)
    w1_p = jnp.zeros((Dp, Hp), jnp.bfloat16).at[:D, :H].set(w1.astype(jnp.bfloat16))
    b1_p = jnp.zeros((1, Hp), jnp.float32).at[:, :H].set(jnp.reshape(b1, (1, H)).astype(jnp.float32))
    w2_p = jnp.zeros((Hp, Op), jnp.bfloat16).at[:H, :O].set(w2.astype(jnp.bfloat16))
    b2_p = jnp.zeros((1, Op), jnp.float32).at[:, :O].set(jnp.reshape(b2, (1, O)).astype(jnp.float32))
    return DAMHeadParams(w1_p, b1_p, w2_p, b2_p, D, H, O)


# --------------------------------------------------------------------------------------
# Wrapper
# --------------------------------------------------------------------------------------
def dam_sequential_head(feats, params: DAMHeadParams, *, tile_b=None, out_dtype=None,
                        target_tile_b=512, vmem_limit_bytes=48 * 1024 * 1024):
    """out = sigmoid(sigmoid(feats @ w1 + b1) @ w2 + b2), one fused Pallas kernel.

    feats:  [B, D] float32 (backbone features)
    params: DAMHeadParams from prepare_dam_head_params (padded + bf16, built once at init).
    """
    B, D = feats.shape
    assert D == params.d, f"feature dim {D} != param dim {params.d}"
    Dp, Hp = params.w1.shape
    Op = params.w2.shape[1]
    O = params.o
    out_dtype = feats.dtype if out_dtype is None else out_dtype

    # ---- batch tiling: minimize padding waste, guarantee >=2 grid steps (v7x megacore),
    # ---- and size against the VMEM budget (v7x has 64 MiB total per TC).
    weight_bytes = params.w1.size * 2 + params.w2.size * 2 + (Hp + Op) * 4   # single-buffered
    per_row_bytes = 2 * Dp * 4 + 2 * Op * 4 + Hp * 4   # x dbl-buf (f32 worst case) + out dbl-buf + h scratch
    vmem_budget = int(vmem_limit_bytes * 0.8)          # headroom for compiler scratch
    max_tile = max(_SUBLANE,
                   ((vmem_budget - weight_bytes) // per_row_bytes) // _SUBLANE * _SUBLANE)

    if tile_b is None:
        if B <= _SUBLANE:
            n_steps = 1
        else:
            n_steps = max(2, _cdiv(B, min(target_tile_b, max_tile)))
        tile_b = min(_round_up(_cdiv(B, n_steps), _SUBLANE), max_tile)
    else:
        tile_b = min(_round_up(tile_b, _SUBLANE), max_tile)
    n_steps = _cdiv(B, tile_b)
    Bp = n_steps * tile_b
    grid = (n_steps,)

    # ---- feature input: no wrapper pad/cast when none is needed (the common backbone case:
    # ---- D multiple of 128, B multiple of the tile).  Otherwise pad + cast to bf16 in one op.
    if Bp == B and Dp == D:
        x_in = feats                                                         # f32, cast in-kernel
    else:
        x_in = jnp.zeros((Bp, Dp), jnp.bfloat16).at[:B, :D].set(feats.astype(jnp.bfloat16))

    flops = 2 * Bp * (Dp * Hp + Hp * Op)
    transcendentals = Bp * (Hp + Op)
    bytes_accessed = (
        x_in.size * x_in.dtype.itemsize
        + weight_bytes
        + Bp * Op * jnp.dtype(out_dtype).itemsize
    )

    def _const_spec(shape):
        # Constant index_map -> operand stays resident; single-buffered to halve its VMEM.
        return pl.BlockSpec(shape, lambda i: (0, 0), pipeline_mode=pl.Buffered(1))

    out_p = pl.pallas_call(
        _mlp_head_kernel,
        out_shape=jax.ShapeDtypeStruct((Bp, Op), out_dtype),
        grid_spec=pltpu.PrefetchScalarGridSpec(
            num_scalar_prefetch=0,
            grid=grid,
            in_specs=[
                pl.BlockSpec((tile_b, Dp), lambda i: (i, 0)),   # feats tile (double-buffered pipeline)
                _const_spec((Dp, Hp)),                          # w1
                _const_spec((1, Hp)),                           # b1
                _const_spec((Hp, Op)),                          # w2
                _const_spec((1, Op)),                           # b2
            ],
            out_specs=pl.BlockSpec((tile_b, Op), lambda i: (i, 0)),
        ),
        compiler_params=pltpu.CompilerParams(
            # TODO(synk): on v7x, if "parallel" alone does not shard the batch axis across the
            # two TensorCores, switch this axis to pltpu.CORE_PARALLEL (or pl.core_map).
            dimension_semantics=("parallel",),
            vmem_limit_bytes=vmem_limit_bytes,
        ),
        cost_estimate=pl.CostEstimate(
            flops=flops,
            transcendentals=transcendentals,
            bytes_accessed=bytes_accessed,
        ),
    )(x_in, params.w1, params.b1, params.w2, params.b2)

    return out_p[:B, :O]


# --------------------------------------------------------------------------------------
# Init / reference / test
# --------------------------------------------------------------------------------------
def init_linear_params(key, fan_in, fan_out):
    """Deterministic init mimicking torch.nn.Linear defaults:
    weight, bias ~ U(-1/sqrt(fan_in), 1/sqrt(fan_in)).
    Weight returned as [in, out] (transpose of torch's [out, in]) for x @ W."""
    kw, kb = jax.random.split(key)
    bound = 1.0 / math.sqrt(fan_in)
    w = jax.random.uniform(kw, (fan_in, fan_out), jnp.float32, -bound, bound)
    b = jax.random.uniform(kb, (1, fan_out), jnp.float32, -bound, bound)
    return w, b


def reference_head(feats, w1, b1, w2, b2):
    h = jax.nn.sigmoid(feats @ w1 + b1)
    return jax.nn.sigmoid(h @ w2 + b2)


if __name__ == "__main__":
    input_dim = 128
    hidden_dim = int(input_dim * 0.5)   # 64
    output_dim = 10

    key = jax.random.PRNGKey(0)
    k_feat_a, k_feat_b, k_l1, k_l2 = jax.random.split(key, 4)

    w1, b1 = init_linear_params(k_l1, input_dim, hidden_dim)
    w2, b2 = init_linear_params(k_l2, hidden_dim, output_dim)
    # Padding + bf16 cast of the constant weights happens once, here (not per call).
    params = prepare_dam_head_params(w1, b1, w2, b2)

    # Backbone features (stand-in for resnet50's `feats`, see TODO above).
    # batch=300 exercises the padded-batch path; batch=256 exercises the zero-copy f32 path.
    for batch, k_feat in ((300, k_feat_a), (256, k_feat_b)):
        feats = jax.random.normal(k_feat, (batch, input_dim), jnp.float32)
        out = jax.block_until_ready(dam_sequential_head(feats, params))
        ref = reference_head(feats, w1, b1, w2, b2)
        assert out.shape == (batch, output_dim), out.shape
        max_err = float(jnp.max(jnp.abs(out - ref)))
        # bf16 MXU inputs / bf16 hidden activations => relaxed tolerance vs f32 reference.
        assert max_err < 2e-2, f"batch={batch}: mismatch vs reference, max abs err {max_err}"

    print("KERNEL_OK")
</pallas_src>

<mosaic_0001>
module attributes {stable_mosaic.version = 11 : i64} {
  func.func @_mlp_head_kernel(%arg0: i32, %arg1: memref<152x128xbf16, #tpu.memory_space<vmem>>, %arg2: memref<128x128xbf16, #tpu.memory_space<vmem>>, %arg3: memref<1x128xf32, #tpu.memory_space<vmem>>, %arg4: memref<128x128xbf16, #tpu.memory_space<vmem>>, %arg5: memref<1x128xf32, #tpu.memory_space<vmem>>, %arg6: memref<152x128xf32, #tpu.memory_space<vmem>>) attributes {dimension_semantics = [#tpu.dimension_semantics<parallel>], iteration_bounds = array<i64: 2>, scalar_prefetch = 0 : i64, scratch_operands = 0 : i64, tpu.core_type = #tpu.core_type<tc>, window_params = [{transform_indices = @transform_0, window_bounds = array<i64: 152, 128>}, {pipeline_mode = #tpu.pipeline_mode<synchronous>, transform_indices = @transform_1, window_bounds = array<i64: 128, 128>}, {pipeline_mode = #tpu.pipeline_mode<synchronous>, transform_indices = @transform_2, window_bounds = array<i64: 1, 128>}, {pipeline_mode = #tpu.pipeline_mode<synchronous>, transform_indices = @transform_3, window_bounds = array<i64: 128, 128>}, {pipeline_mode = #tpu.pipeline_mode<synchronous>, transform_indices = @transform_4, window_bounds = array<i64: 1, 128>}, {transform_indices = @transform_5, window_bounds = array<i64: 152, 128>}]} {
    %c0 = arith.constant 0 : index
    %c0_0 = arith.constant 0 : index
    %0 = vector.load %arg1[%c0, %c0_0] : memref<152x128xbf16, #tpu.memory_space<vmem>>, vector<152x128xbf16>
    %c0_1 = arith.constant 0 : index
    %c0_2 = arith.constant 0 : index
    %1 = vector.load %arg2[%c0_1, %c0_2] : memref<128x128xbf16, #tpu.memory_space<vmem>>, vector<128x128xbf16>
    %cst = arith.constant dense<0.000000e+00> : vector<152x128xf32>
    %2 = tpu.matmul %0, %1, %cst {dimension_numbers = #tpu.dot_dimension_numbers<[1], [0], [0], [1], [0, 0, 1, 1], [], []>} : vector<152x128xbf16>, vector<128x128xbf16>, vector<152x128xf32> -> vector<152x128xf32>
    %c0_3 = arith.constant 0 : index
    %c0_4 = arith.constant 0 : index
    %3 = vector.load %arg3[%c0_3, %c0_4] : memref<1x128xf32, #tpu.memory_space<vmem>>, vector<1x128xf32>
    %4 = vector.broadcast %3 : vector<1x128xf32> to vector<152x128xf32>
    %5 = arith.addf %2, %4 : vector<152x128xf32>
    %cst_5 = arith.constant 5.000000e-01 : f32
    %6 = vector.broadcast %cst_5 : f32 to vector<152x128xf32>
    %7 = arith.mulf %6, %5 : vector<152x128xf32>
    %8 = math.tanh %7 : vector<152x128xf32>
    %cst_6 = arith.constant 5.000000e-01 : f32
    %9 = vector.broadcast %cst_6 : f32 to vector<152x128xf32>
    %10 = arith.mulf %9, %8 : vector<152x128xf32>
    %cst_7 = arith.constant 5.000000e-01 : f32
    %11 = vector.broadcast %cst_7 : f32 to vector<152x128xf32>
    %12 = arith.addf %10, %11 : vector<152x128xf32>
    %13 = arith.truncf %12 : vector<152x128xf32> to vector<152x128xbf16>
    %c0_8 = arith.constant 0 : index
    %c0_9 = arith.constant 0 : index
    %14 = vector.load %arg4[%c0_8, %c0_9] : memref<128x128xbf16, #tpu.memory_space<vmem>>, vector<128x128xbf16>
    %cst_10 = arith.constant dense<0.000000e+00> : vector<152x128xf32>
    %15 = tpu.matmul %13, %14, %cst_10 {dimension_numbers = #tpu.dot_dimension_numbers<[1], [0], [0], [1], [0, 0, 1, 1], [], []>} : vector<152x128xbf16>, vector<128x128xbf16>, vector<152x128xf32> -> vector<152x128xf32>
    %c0_11 = arith.constant 0 : index
    %c0_12 = arith.constant 0 : index
    %16 = vector.load %arg5[%c0_11, %c0_12] : memref<1x128xf32, #tpu.memory_space<vmem>>, vector<1x128xf32>
    %17 = vector.broadcast %16 : vector<1x128xf32> to vector<152x128xf32>
    %18 = arith.addf %15, %17 : vector<152x128xf32>
    %cst_13 = arith.constant 5.000000e-01 : f32
    %19 = vector.broadcast %cst_13 : f32 to vector<152x128xf32>
    %20 = arith.mulf %19, %18 : vector<152x128xf32>
    %21 = math.tanh %20 : vector<152x128xf32>
    %cst_14 = arith.constant 5.000000e-01 : f32
    %22 = vector.broadcast %cst_14 : f32 to vector<152x128xf32>
    %23 = arith.mulf %22, %21 : vector<152x128xf32>
    %cst_15 = arith.constant 5.000000e-01 : f32
    %24 = vector.broadcast %cst_15 : f32 to vector<152x128xf32>
    %25 = arith.addf %23, %24 : vector<152x128xf32>
    %c0_16 = arith.constant 0 : index
    %c0_17 = arith.constant 0 : index
    %26 = vector.load %arg6[%c0_16, %c0_17] : memref<152x128xf32, #tpu.memory_space<vmem>>, vector<152x128xf32>
    tpu.vector_store %arg6[%c0_16, %c0_17], %25 {strides = array<i32>} : memref<152x128xf32, #tpu.memory_space<vmem>>, vector<152x128xf32>,
    return
  }
  func.func @transform_0(%arg0: i32) -> (i32, i32) {
    %c0_i32 = arith.constant 0 : i32
    %c0_i32_0 = arith.constant 0 : i32
    return %arg0, %c0_i32 : i32, i32
  }
  func.func @transform_1(%arg0: i32) -> (i32, i32) {
    %c0_i32 = arith.constant 0 : i32
    %c0_i32_0 = arith.constant 0 : i32
    %c0_i32_1 = arith.constant 0 : i32
    return %c0_i32, %c0_i32_0 : i32, i32
  }
  func.func @transform_2(%arg0: i32) -> (i32, i32) {
    %c0_i32 = arith.constant 0 : i32
    %c0_i32_0 = arith.constant 0 : i32
    %c0_i32_1 = arith.constant 0 : i32
    return %c0_i32, %c0_i32_0 : i32, i32
  }
  func.func @transform_3(%arg0: i32) -> (i32, i32) {
    %c0_i32 = arith.constant 0 : i32
    %c0_i32_0 = arith.constant 0 : i32
    %c0_i32_1 = arith.constant 0 : i32
    return %c0_i32, %c0_i32_0 : i32, i32
  }
  func.func @transform_4(%arg0: i32) -> (i32, i32) {
    %c0_i32 = arith.constant 0 : i32
    %c0_i32_0 = arith.constant 0 : i32
    %c0_i32_1 = arith.constant 0 : i32
    return %c0_i32, %c0_i32_0 : i32, i32
  }
  func.func @transform_5(%arg0: i32) -> (i32, i32) {
    %c0_i32 = arith.constant 0 : i32
    %c0_i32_0 = arith.constant 0 : i32
    return %arg0, %c0_i32 : i32, i32
  }
}

</mosaic_0001>

<llo_original>
// kernel: tpu_custom_call.1
$region0: #{tpu_custom_call.1}
  #allocation0 [shape = 'u32[]', space=smem, size = 0x4, offset = 0x4, fixed_abs, tag = 'smem constant byte address 0x4 - core index']
  #allocation1 [shape = 'u32[144,128]{1,0:T(1,128)}', space=vmem, size = 0x12000, scoped, tag = 'internal scratch']
  %s0 = inlined_call_operand.hbm [shape: bf16[304,128], index: 0, kind: input, shape index: {}]
  %s1 = inlined_call_operand.hbm [shape: bf16[128,128], index: 1, kind: input, shape index: {}]
  %s2 = inlined_call_operand.vmem [shape: f32[1,128], index: 2, kind: input, shape index: {}]
  %s3 = inlined_call_operand.hbm [shape: bf16[128,128], index: 3, kind: input, shape index: {}]
  %s4 = inlined_call_operand.vmem [shape: f32[1,128], index: 4, kind: input, shape index: {}]
  %s5 = inlined_call_operand.hbm [shape: f32[304,128], index: 5, kind: output, shape index: {}]
  %s6 = sld [smem:[#allocation0]]
  $region65: #{tpu_custom_call.1} parent=0
    _
  %s8 = ssub.s32 1, %s6
  %s9 = scalar_select 0, %s8, %s6
  $region1: #{tpu_custom_call.1} parent=0
    #allocation2 [shape = 'u8[77824]{0}', space=vmem, size = 0x13000, scoped, tag = 'input window, operand 0']
    #allocation3 [shape = 's32[2]{0}', space=sflag, size = 0x8, scoped, tag = 'scoped memory for tpu_custom_call.1']
    #allocation4 [shape = 's32[2]{0}', space=sflag, size = 0x8, scoped, tag = 'scoped memory for tpu_custom_call.1']
    #allocation5 [shape = 'u8[32768]{0}', space=vmem, size = 0x8000, scoped, tag = 'input window, operand 1, single buffered']
    #allocation6 [shape = 's32[1]{0}', space=sflag, size = 0x4, scoped, tag = 'scoped memory for tpu_custom_call.1']
    #allocation7 [shape = 'u8[32768]{0}', space=vmem, size = 0x8000, scoped, tag = 'input window, operand 3, single buffered']
    #allocation8 [shape = 'u8[155648]{0}', space=vmem, size = 0x26000, scoped, tag = 'output window, operand 0']
    %10 = vsyncpa [#allocation3], 0
    %s11 = scalar_lea.sflag [#allocation3], 1
    %12 = vsyncpa %s11, 0
    %13 = vsyncpa [#allocation6], 0
    %14 = vsyncpa [#allocation4], 0
    %s15 = scalar_lea.sflag [#allocation4], 1
    %16 = vsyncpa %s15, 0
    loop: start=0, step=1, limit=4
    $region2: #{tpu_custom_call.1} parent=1 // loop_pre_header
      _
    $region3: #{tpu_custom_call.1} parent=1 // loop_header
      %s18 = sphi 0, %s22
      %p19 = scmp.ge.s32.totalorder %s18, 4
      %s28 = sphi 0, %s30
      %s31 = sphi 0, %s28
      %s32 = sphi 0, %s31
      %s48 = sphi 0, %s32
      %s52 = sphi 0, %s52
      %s54 = sphi 0, %s52
      %s55 = sphi 0, %s54
      %s69 = sphi 0, %s55
      %s73 = sphi 0, %s73
      %s75 = sphi 0, %s73
      %s76 = sphi 0, %s75
      %s90 = sphi 0, %s76
      %s94 = sphi 0, %s94
      %s96 = sphi 0, %s94
      %s97 = sphi 0, %s96
      %s111 = sphi 0, %s97
      %s115 = sphi 0, %s115
      %s117 = sphi 0, %s115
      %s118 = sphi 0, %s117
      %s132 = sphi 0, %s118
      %s138 = sphi 0, %s140
      %s141 = sphi 0, %s138
      %s142 = sphi 0, %s141
      %s158 = sphi 0, %s142
    $region4: #{tpu_custom_call.1} parent=1 // loop_header_branch
      %21 = sbr.rel (%p19) target = $region8
    $region5: #{tpu_custom_call.1} parent=1 // loop_body
      %s23 = ssub.s32 %s18, 1
      %s24 = ssub.s32 %s18, 2
      %s25 = sadd.s32 %s18, 1
      %s26 = ssub.s32 %s18, %s25
      %p27 = scmp.eq.s32.totalorder %s26, 0
      %s29 = sadd.s32 %s28, 1
      %s30 = scalar_select %p27, %s28, %s29
      %p33 = pneg %p27
      %p34 = scmp.eq.s32.totalorder %s18, 1
      %p35 = por %p33, %p34
      %p36 = scmp.ne.s32.totalorder %s28, %s31
      %p37 = scmp.eq.s32.totalorder %s18, 0
      %p38 = por %p36, %p37
      %p39 = scmp.ne.s32.totalorder %s28, %s31
      %p40 = scmp.eq.s32.totalorder %s23, 1
      %p41 = por %p39, %p40
      %p42 = scmp.ne.s32.totalorder %s31, %s32
      %p43 = scmp.eq.s32.totalorder %s23, 0
      %p44 = por %p42, %p43
      %p45 = scmp.ne.s32.totalorder %s31, %s32
      %p46 = scmp.eq.s32.totalorder %s24, 1
      %p47 = por %p45, %p46
      %p49 = scmp.ne.s32.totalorder %s32, %s48
      %p50 = scmp.eq.s32.totalorder %s24, 0
      %p51 = por %p49, %p50
      %s53 = sadd.s32 %s52, 1
      %p56 = scmp.eq.s32.totalorder %s18, 1
      %p57 = scmp.ne.s32.totalorder %s52, %s54
      %p58 = scmp.eq.s32.totalorder %s18, 0
      %p59 = por %p57, %p58
      %p60 = scmp.ne.s32.totalorder %s52, %s54
      %p61 = scmp.eq.s32.totalorder %s23, 1
      %p62 = por %p60, %p61
      %p63 = scmp.ne.s32.totalorder %s54, %s55
      %p64 = scmp.eq.s32.totalorder %s23, 0
      %p65 = por %p63, %p64
      %p66 = scmp.ne.s32.totalorder %s54, %s55
      %p67 = scmp.eq.s32.totalorder %s24, 1
      %p68 = por %p66, %p67
      %p70 = scmp.ne.s32.totalorder %s55, %s69
      %p71 = scmp.eq.s32.totalorder %s24, 0
      %p72 = por %p70, %p71
      %s74 = sadd.s32 %s73, 1
      %p77 = scmp.eq.s32.totalorder %s18, 1
      %p78 = scmp.ne.s32.totalorder %s73, %s75
      %p79 = scmp.eq.s32.totalorder %s18, 0
      %p80 = por %p78, %p79
      %p81 = scmp.ne.s32.totalorder %s73, %s75
      %p82 = scmp.eq.s32.totalorder %s23, 1
      %p83 = por %p81, %p82
      %p84 = scmp.ne.s32.totalorder %s75, %s76
      %p85 = scmp.eq.s32.totalorder %s23, 0
      %p86 = por %p84, %p85
      %p87 = scmp.ne.s32.totalorder %s75, %s76
      %p88 = scmp.eq.s32.totalorder %s24, 1
      %p89 = por %p87, %p88
      %p91 = scmp.ne.s32.totalorder %s76, %s90
      %p92 = scmp.eq.s32.totalorder %s24, 0
      %p93 = por %p91, %p92
      %s95 = sadd.s32 %s94, 1
      %p98 = scmp.eq.s32.totalorder %s18, 1
      %p99 = scmp.ne.s32.totalorder %s94, %s96
      %p100 = scmp.eq.s32.totalorder %s18, 0
      %p101 = por %p99, %p100
      %p102 = scmp.ne.s32.totalorder %s94, %s96
      %p103 = scmp.eq.s32.totalorder %s23, 1
      %p104 = por %p102, %p103
      %p105 = scmp.ne.s32.totalorder %s96, %s97
      %p106 = scmp.eq.s32.totalorder %s23, 0
      %p107 = por %p105, %p106
      %p108 = scmp.ne.s32.totalorder %s96, %s97
      %p109 = scmp.eq.s32.totalorder %s24, 1
      %p110 = por %p108, %p109
      %p112 = scmp.ne.s32.totalorder %s97, %s111
      %p113 = scmp.eq.s32.totalorder %s24, 0
      %p114 = por %p112, %p113
      %s116 = sadd.s32 %s115, 1
      %p119 = scmp.eq.s32.totalorder %s18, 1
      %p120 = scmp.ne.s32.totalorder %s115, %s117
      %p121 = scmp.eq.s32.totalorder %s18, 0
      %p122 = por %p120, %p121
      %p123 = scmp.ne.s32.totalorder %s115, %s117
      %p124 = scmp.eq.s32.totalorder %s23, 1
      %p125 = por %p123, %p124
      %p126 = scmp.ne.s32.totalorder %s117, %s118
      %p127 = scmp.eq.s32.totalorder %s23, 0
      %p128 = por %p126, %p127
      %p129 = scmp.ne.s32.totalorder %s117, %s118
      %p130 = scmp.eq.s32.totalorder %s24, 1
      %p131 = por %p129, %p130
      %p133 = scmp.ne.s32.totalorder %s118, %s132
      %p134 = scmp.eq.s32.totalorder %s24, 0
      %p135 = por %p133, %p134
      %s136 = ssub.s32 %s18, %s25
      %p137 = scmp.eq.s32.totalorder %s136, 0
      %s139 = sadd.s32 %s138, 1
      %s140 = scalar_select %p137, %s138, %s139
      %p143 = pneg %p137
      %p144 = scmp.eq.s32.totalorder %s18, 1
      %p145 = por %p143, %p144
      %p146 = scmp.ne.s32.totalorder %s138, %s141
      %p147 = scmp.eq.s32.totalorder %s18, 0
      %p148 = por %p146, %p147
      %p149 = scmp.ne.s32.totalorder %s138, %s141
      %p150 = scmp.eq.s32.totalorder %s23, 1
      %p151 = por %p149, %p150
      %p152 = scmp.ne.s32.totalorder %s141, %s142
      %p153 = scmp.eq.s32.totalorder %s23, 0
      %p154 = por %p152, %p153
      %p155 = scmp.ne.s32.totalorder %s141, %s142
      %p156 = scmp.eq.s32.totalorder %s24, 1
      %p157 = por %p155, %p156
      %p159 = scmp.ne.s32.totalorder %s142, %s158
      %p160 = scmp.eq.s32.totalorder %s24, 0
      %p161 = por %p159, %p160
      %p162 = scmp.le.s32.totalorder 1, %s18
      %p163 = scmp.lt.s32.totalorder %s18, 3
      %p164 = pnand %p162, %p163
      %p165 = pneg %p164
      // Predicated region
      $region9: #{tpu_custom_call.1} parent=5 // pred_check
        _
      $region10: #{tpu_custom_call.1} parent=5 // pred_check_branch
        %167 = sbr.rel (%p164) target = $region12
      $region11: #{tpu_custom_call.1} parent=5 // pred_region
        %s168 = ssub.s32 %s18, 1
        // Predicated region
        $region13: #{tpu_custom_call.1} parent=11 // pred_check
          %p169 = pneg %p65
        $region14: #{tpu_custom_call.1} parent=11 // pred_check_branch
          %171 = sbr.rel (%p169) target = $region16
        $region15: #{tpu_custom_call.1} parent=11 // pred_region
          %s173 = ssub.s32 1024, 1024
          %174 = vsyncadd [#allocation6], %s173
          %s175 = sshll.u32 [#allocation5], 4
          %s176 = int_to_ptr.vmem [resolvable:$true] %s175
          %181 = dma.hbm_to_vmem [thread:$0]  %s1, 1024, %s176, [#allocation6], 64, 64, 4
        $region16: #{tpu_custom_call.1} parent=11 // pred_fallthru
          _
        // Predicated region
        $region17: #{tpu_custom_call.1} parent=11 // pred_check
          %p182 = pneg %p86
        $region18: #{tpu_custom_call.1} parent=11 // pred_check_branch
          %184 = sbr.rel (%p182) target = $region20
        $region19: #{tpu_custom_call.1} parent=11 // pred_region
          _
        $region20: #{tpu_custom_call.1} parent=11 // pred_fallthru
          _
        // Predicated region
        $region21: #{tpu_custom_call.1} parent=11 // pred_check
          %p185 = pneg %p107
        $region22: #{tpu_custom_call.1} parent=11 // pred_check_branch
          %187 = sbr.rel (%p185) target = $region24
        $region23: #{tpu_custom_call.1} parent=11 // pred_region
          %s189 = ssub.s32 1024, 1024
          %190 = vsyncadd [#allocation6], %s189
          %s191 = sshll.u32 [#allocation7], 4
          %s192 = int_to_ptr.vmem [resolvable:$true] %s191
          %197 = dma.hbm_to_vmem [thread:$0]  %s3, 1024, %s192, [#allocation6], 64, 64, 4
        $region24: #{tpu_custom_call.1} parent=11 // pred_fallthru
          _
        // Predicated region
        $region25: #{tpu_custom_call.1} parent=11 // pred_check
          %p198 = pneg %p128
        $region26: #{tpu_custom_call.1} parent=11 // pred_check_branch
          %200 = sbr.rel (%p198) target = $region28
        $region27: #{tpu_custom_call.1} parent=11 // pred_region
          _
        $region28: #{tpu_custom_call.1} parent=11 // pred_fallthru
          _
      $region12: #{tpu_custom_call.1} parent=5 // pred_fallthru
        _
      %p201 = scmp.lt.s32.totalorder %s18, 2
      // Predicated region
      $region29: #{tpu_custom_call.1} parent=5 // pred_check
        %p202 = pneg %p201
      $region30: #{tpu_custom_call.1} parent=5 // pred_check_branch
        %204 = sbr.rel (%p202) target = $region32
      $region31: #{tpu_custom_call.1} parent=5 // pred_region
        // Predicated region
        $region33: #{tpu_custom_call.1} parent=31 // pred_check
          %p205 = pneg %p38
        $region34: #{tpu_custom_call.1} parent=31 // pred_check_branch
          %207 = sbr.rel (%p205) target = $region36
        $region35: #{tpu_custom_call.1} parent=31 // pred_region
          %s208 = sand.u32 %s28, 1
          %s209 = scalar_lea.sflag [#allocation3], %s208
          %s210 = sand.u32 %s28, 1
          %s211 = smul.addr %s210, 76
          %s212 = scalar_lea.vmem [#allocation2], %s211
          %s213 = smul.u32 19, %s18
          %s215 = ssub.s32 1216, 1216
          %216 = vsyncadd %s209, %s215
          %s217 = smul.addr %s213, 64
          %s218 = scalar_lea.hbm %s0, %s217
          %s219 = sshll.u32 %s212, 4
          %s220 = int_to_ptr.vmem [resolvable:$true] %s219
          %225 = dma.hbm_to_vmem [thread:$0]  %s218, 1216, %s220, %s209, 64, 64, 4
        $region36: #{tpu_custom_call.1} parent=31 // pred_fallthru
          _
      $region32: #{tpu_custom_call.1} parent=5 // pred_fallthru
        _
      %p226 = scmp.le.s32.totalorder 1, %s18
      %p227 = scmp.lt.s32.totalorder %s18, 3
      %p228 = pnand %p226, %p227
      %p229 = pneg %p228
      // Predicated region
      $region37: #{tpu_custom_call.1} parent=5 // pred_check
        _
      $region38: #{tpu_custom_call.1} parent=5 // pred_check_branch
        %231 = sbr.rel (%p228) target = $region40
      $region39: #{tpu_custom_call.1} parent=5 // pred_region
        %s232 = ssub.s32 %s18, 1
        %s233 = sand.u32 %s31, 1
        %s234 = scalar_lea.sflag [#allocation3], %s233
        %s235 = sand.u32 %s31, 1
        %s236 = smul.addr %s235, 76
        %s237 = scalar_lea.vmem [#allocation2], %s236
        // Predicated region
        $region41: #{tpu_custom_call.1} parent=39 // pred_check
          %p238 = pneg %p44
        $region42: #{tpu_custom_call.1} parent=39 // pred_check_branch
          %240 = sbr.rel (%p238) target = $region44
        $region43: #{tpu_custom_call.1} parent=39 // pred_region
          %241 = dma.done %s234, 1216
        $region44: #{tpu_custom_call.1} parent=39 // pred_fallthru
          _
        // Predicated region
        $region45: #{tpu_custom_call.1} parent=39 // pred_check
          %p242 = pneg %p65
        $region46: #{tpu_custom_call.1} parent=39 // pred_check_branch
          %244 = sbr.rel (%p242) target = $region48
        $region47: #{tpu_custom_call.1} parent=39 // pred_region
          %245 = dma.done [#allocation6], 1024
        $region48: #{tpu_custom_call.1} parent=39 // pred_fallthru
          _
        // Predicated region
        $region49: #{tpu_custom_call.1} parent=39 // pred_check
          %p246 = pneg %p107
        $region50: #{tpu_custom_call.1} parent=39 // pred_check_branch
          %248 = sbr.rel (%p246) target = $region52
        $region51: #{tpu_custom_call.1} parent=39 // pred_region
          %249 = dma.done [#allocation6], 1024
        $region52: #{tpu_custom_call.1} parent=39 // pred_fallthru
          _
        %s250 = sand.u32 %s31, 1
        %s251 = scalar_lea.sflag [#allocation3], %s250
        %s252 = sand.u32 %s31, 1
        %s253 = smul.addr %s252, 76
        %s254 = scalar_lea.vmem [#allocation2], %s253
        %p255 = pneg %p44
        %p256 = pneg %p41
        %p257 = pneg %p65
        %p258 = pneg %p62
        %p259 = pneg %p86
        %p260 = pneg %p83
        %p261 = pneg %p107
        %p262 = pneg %p104
        %p263 = pneg %p128
        %p264 = pneg %p125
        %p265 = pneg %p154
        %p266 = pneg %p151
        %s267 = sand.u32 %s141, 1
        %s268 = scalar_lea.sflag [#allocation4], %s267
        %s269 = sand.u32 %s141, 1
        %s270 = smul.addr %s269, 152
        %s271 = scalar_lea.vmem [#allocation8], %s270
        %s272 = smul.u32 19, %s23
        %s273 = smul.u32 19, %s23
        %v275 = vld [vmem:[%s237] sm:$0xf]
        %v276 = vld [vmem:[%s237 + $0x4] sm:$0xf]
        %v277 = vld [vmem:[%s237 + $0x8] sm:$0xf]
        %v278 = vld [vmem:[%s237 + $0xc] sm:$0xf]
        %v279 = vld [vmem:[%s237 + $0x10] sm:$0xf]
        %v280 = vld [vmem:[%s237 + $0x14] sm:$0xf]
        %v281 = vld [vmem:[%s237 + $0x18] sm:$0xf]
        %v282 = vld [vmem:[%s237 + $0x1c] sm:$0xf]
        %v283 = vld [vmem:[%s237 + $0x20] sm:$0xf]
        %v284 = vld [vmem:[%s237 + $0x24] sm:$0xf]
        %v285 = vld [vmem:[%s237 + $0x28] sm:$0xf]
        %v286 = vld [vmem:[%s237 + $0x2c] sm:$0xf]
        %v287 = vld [vmem:[%s237 + $0x30] sm:$0xf]
        %v288 = vld [vmem:[%s237 + $0x34] sm:$0xf]
        %v289 = vld [vmem:[%s237 + $0x38] sm:$0xf]
        %v290 = vld [vmem:[%s237 + $0x3c] sm:$0xf]
        %v291 = vld [vmem:[%s237 + $0x40] sm:$0xf]
        %v292 = vld [vmem:[%s237 + $0x44] sm:$0xf]
        %v293 = vld [vmem:[%s237 + $0x48] sm:$0xf]
        %v294 = vld [vmem:[#allocation5] sm:$0xf]
        %v295 = vld [vmem:[#allocation5 + $0x4] sm:$0xf]
        %v296 = vld [vmem:[#allocation5 + $0x8] sm:$0xf]
        %v297 = vld [vmem:[#allocation5 + $0xc] sm:$0xf]
        %v298 = vld [vmem:[#allocation5 + $0x10] sm:$0xf]
        %v299 = vld [vmem:[#allocation5 + $0x14] sm:$0xf]
        %v300 = vld [vmem:[#allocation5 + $0x18] sm:$0xf]
        %v301 = vld [vmem:[#allocation5 + $0x1c] sm:$0xf]
        %v302 = vld [vmem:[#allocation5 + $0x20] sm:$0xf]
        %v303 = vld [vmem:[#allocation5 + $0x24] sm:$0xf]
        %v304 = vld [vmem:[#allocation5 + $0x28] sm:$0xf]
        %v305 = vld [vmem:[#allocation5 + $0x2c] sm:$0xf]
        %v306 = vld [vmem:[#allocation5 + $0x30] sm:$0xf]
        %v307 = vld [vmem:[#allocation5 + $0x34] sm:$0xf]
        %v308 = vld [vmem:[#allocation5 + $0x38] sm:$0xf]
        %v309 = vld [vmem:[#allocation5 + $0x3c] sm:$0xf]
        %v310 = vld [vmem:[%s2] sm:$0x1]
        %v312 = vlaneseq
        %v313 = vshrl.u32 %v312, 7
        %v314 = vsub.s32 0, %v313
        %v315 = vrot.slane %v310, %v314
        %v336 = vunpack.c.l.b16 %v275
        %v337 = vunpack.c.l.b16 %v276
        %v338 = vunpack.c.l.b16 %v277
        %v339 = vunpack.c.l.b16 %v278
        %v340 = vunpack.c.l.b16 %v279
        %v341 = vunpack.c.l.b16 %v280
        %v342 = vunpack.c.l.b16 %v281
        %v343 = vunpack.c.l.b16 %v282
        %v344 = vunpack.c.l.b16 %v283
        %v345 = vunpack.c.l.b16 %v284
        %v346 = vunpack.c.l.b16 %v285
        %v347 = vunpack.c.l.b16 %v286
        %v348 = vunpack.c.l.b16 %v287
        %v349 = vunpack.c.l.b16 %v288
        %v350 = vunpack.c.l.b16 %v289
        %v351 = vunpack.c.l.b16 %v290
        %v352 = vunpack.c.l.b16 %v291
        %v353 = vunpack.c.l.b16 %v292
        %v354 = vunpack.c.l.b16 %v293
        %v355 = vpack.c.b16 %v337, %v336
        %v356 = vpack.c.b16 %v339, %v338
        %v357 = vpack.c.b16 %v341, %v340
        %v358 = vpack.c.b16 %v343, %v342
        %v359 = vpack.c.b16 %v345, %v344
        %v360 = vpack.c.b16 %v347, %v346
        %v361 = vpack.c.b16 %v349, %v348
        %v362 = vpack.c.b16 %v351, %v350
        %v363 = vpack.c.b16 %v353, %v352
        %v364 = vpack.c.b16 %v354, %v354
        %v391 = vunpack.c.l.b16 %v294
        %v392 = vunpack.c.l.b16 %v295
        %v393 = vunpack.c.l.b16 %v296
        %v394 = vunpack.c.l.b16 %v297
        %v395 = vunpack.c.l.b16 %v298
        %v396 = vunpack.c.l.b16 %v299
        %v397 = vunpack.c.l.b16 %v300
        %v398 = vunpack.c.l.b16 %v301
        %v399 = vunpack.c.l.b16 %v302
        %v400 = vunpack.c.l.b16 %v303
        %v401 = vunpack.c.l.b16 %v304
        %v402 = vunpack.c.l.b16 %v305
        %v403 = vunpack.c.l.b16 %v306
        %v404 = vunpack.c.l.b16 %v307
        %v405 = vunpack.c.l.b16 %v308
        %v406 = vunpack.c.l.b16 %v309
        %v407 = vpack.c.b16 %v392, %v391
        %v408 = vpack.c.b16 %v394, %v393
        %v409 = vpack.c.b16 %v396, %v395
        %v410 = vpack.c.b16 %v398, %v397
        %v411 = vpack.c.b16 %v400, %v399
        %v412 = vpack.c.b16 %v402, %v401
        %v413 = vpack.c.b16 %v404, %v403
        %v414 = vpack.c.b16 %v406, %v405
        %423 = vmatprep.subr.bf16.mxu0 0
        %424 = vmatpush1.bf16.msra.mxu0 %v407
        %425 = vmatprep.subr.bf16.mxu0 0
        %426 = vmatpush1.bf16.msra.mxu0 %v408
        %427 = vmatprep.subr.bf16.mxu0 0
        %428 = vmatpush1.bf16.msra.mxu0 %v409
        %429 = vmatprep.subr.bf16.mxu0 0
        %430 = vmatpush1.bf16.msra.mxu0 %v410
        %431 = vmatprep.subr.bf16.mxu0 0
        %432 = vmatpush1.bf16.msra.mxu0 %v411
        %433 = vmatprep.subr.bf16.mxu0 0
        %434 = vmatpush1.bf16.msra.mxu0 %v412
        %435 = vmatprep.subr.bf16.mxu0 0
        %436 = vmatpush1.bf16.msra.mxu0 %v413
        %437 = vmatprep.subr.bf16.mxu0 0
        %438 = vmatpush1.bf16.msra.mxu0 %v414
        %439 = vmatprep.subr.bf16.mxu0 0
        %440 = vmatpush1.bf16.msra.mxu0 0
        %441 = vmatprep.subr.bf16.mxu0 0
        %442 = vmatpush1.bf16.msra.mxu0 0
        %443 = vmatprep.subr.bf16.mxu0 0
        %444 = vmatpush1.bf16.msra.mxu0 0
        %445 = vmatprep.subr.bf16.mxu0 0
        %446 = vmatpush1.bf16.msra.mxu0 0
        %447 = vmatprep.subr.bf16.mxu0 0
        %448 = vmatpush1.bf16.msra.mxu0 0
        %449 = vmatprep.subr.bf16.mxu0 0
        %450 = vmatpush1.bf16.msra.mxu0 0
        %451 = vmatprep.subr.bf16.mxu0 0
        %452 = vmatpush1.bf16.msra.mxu0 0
        %453 = vmatprep.subr.bf16.mxu0 0
        %454 = vmatpush1.bf16.msra.mxu0 0
        %455 = vmatprep.mubr.bf16.mxu0 0
        %456 = vmatmul.mubr.bf16.gmra.mrb[0].mxu0 %v355
        %v457 = vpop.f32.mrb[0].mxu0
        %v458 = vadd.f32 %v315, %v457
        %v459 = vpop.f32.mrb[0].mxu0
        %v460 = vpop.f32.mrb[0].mxu0
        %v461 = vadd.f32 %v315, %v460
        %v462 = vpop.f32.mrb[0].mxu0
        %463 = vmatprep.mubr.bf16.mxu0 0
        %464 = vmatmul.mubr.bf16.gmra.mrb[0].mxu0 %v356
        %v465 = vpop.f32.mrb[0].mxu0
        %v466 = vadd.f32 %v315, %v465
        %v467 = vpop.f32.mrb[0].mxu0
        %v468 = vpop.f32.mrb[0].mxu0
        %v469 = vadd.f32 %v315, %v468
        %v470 = vpop.f32.mrb[0].mxu0
        %471 = vmatprep.mubr.bf16.mxu0 0
        %472 = vmatmul.mubr.bf16.gmra.mrb[0].mxu0 %v357
        %v473 = vpop.f32.mrb[0].mxu0
        %v474 = vadd.f32 %v315, %v473
        %v475 = vpop.f32.mrb[0].mxu0
        %v476 = vpop.f32.mrb[0].mxu0
        %v477 = vadd.f32 %v315, %v476
        %v478 = vpop.f32.mrb[0].mxu0
        %479 = vmatprep.mubr.bf16.mxu0 0
        %480 = vmatmul.mubr.bf16.gmra.mrb[0].mxu0 %v358
        %v481 = vpop.f32.mrb[0].mxu0
        %v482 = vadd.f32 %v315, %v481
        %v483 = vpop.f32.mrb[0].mxu0
        %v484 = vpop.f32.mrb[0].mxu0
        %v485 = vadd.f32 %v315, %v484
        %v486 = vpop.f32.mrb[0].mxu0
        %487 = vmatprep.mubr.bf16.mxu0 0
        %488 = vmatmul.mubr.bf16.gmra.mrb[0].mxu0 %v359
        %v489 = vpop.f32.mrb[0].mxu0
        %v490 = vadd.f32 %v315, %v489
        %v491 = vpop.f32.mrb[0].mxu0
        %v492 = vpop.f32.mrb[0].mxu0
        %v493 = vadd.f32 %v315, %v492
        %v494 = vpop.f32.mrb[0].mxu0
        %495 = vmatprep.mubr.bf16.mxu0 0
        %496 = vmatmul.mubr.bf16.gmra.mrb[0].mxu0 %v360
        %v497 = vpop.f32.mrb[0].mxu0
        %v498 = vadd.f32 %v315, %v497
        %v499 = vpop.f32.mrb[0].mxu0
        %v500 = vpop.f32.mrb[0].mxu0
        %v501 = vadd.f32 %v315, %v500
        %v502 = vpop.f32.mrb[0].mxu0
        %503 = vmatprep.mubr.bf16.mxu0 0
        %504 = vmatmul.mubr.bf16.gmra.mrb[0].mxu0 %v361
        %v505 = vpop.f32.mrb[0].mxu0
        %v506 = vadd.f32 %v315, %v505
        %v507 = vpop.f32.mrb[0].mxu0
        %v508 = vpop.f32.mrb[0].mxu0
        %v509 = vadd.f32 %v315, %v508
        %v510 = vpop.f32.mrb[0].mxu0
        %511 = vmatprep.mubr.bf16.mxu0 0
        %512 = vmatmul.mubr.bf16.gmra.mrb[0].mxu0 %v362
        %v513 = vpop.f32.mrb[0].mxu0
        %v514 = vadd.f32 %v315, %v513
        %v515 = vpop.f32.mrb[0].mxu0
        %v516 = vpop.f32.mrb[0].mxu0
        %v517 = vadd.f32 %v315, %v516
        %v518 = vpop.f32.mrb[0].mxu0
        %519 = vmatprep.mubr.bf16.mxu0 0
        %520 = vmatmul.mubr.bf16.gmra.mrb[0].mxu0 %v363
        %v521 = vpop.f32.mrb[0].mxu0
        %v522 = vadd.f32 %v315, %v521
        %v523 = vpop.f32.mrb[0].mxu0
        %v524 = vpop.f32.mrb[0].mxu0
        %v525 = vadd.f32 %v315, %v524
        %v526 = vpop.f32.mrb[0].mxu0
        %527 = vmatprep.mubr.bf16.mxu0 0
        %528 = vmatmul.mubr.bf16.gmra.mrb[0].mxu0 %v364
        %v529 = vpop.f32.mrb[0].mxu0
        %v530 = vadd.f32 %v315, %v529
        %v531 = vpop.f32.mrb[0].mxu0
        %v532 = vpop.f32.mrb[0].mxu0
        %v533 = vpop.f32.mrb[0].mxu0
        %534 = vdwg.mxu0
        %v535 = vmul.f32 %v458, 0.5
        %v536 = vmul.f32 %v461, 0.5
        %v537 = vmul.f32 %v466, 0.5
        %v538 = vmul.f32 %v469, 0.5
        %v539 = vmul.f32 %v474, 0.5
        %v540 = vmul.f32 %v477, 0.5
        %v541 = vmul.f32 %v482, 0.5
        %v542 = vmul.f32 %v485, 0.5
        %v543 = vmul.f32 %v490, 0.5
        %v544 = vmul.f32 %v493, 0.5
        %v545 = vmul.f32 %v498, 0.5
        %v546 = vmul.f32 %v501, 0.5
        %v547 = vmul.f32 %v506, 0.5
        %v548 = vmul.f32 %v509, 0.5
        %v549 = vmul.f32 %v514, 0.5
        %v550 = vmul.f32 %v517, 0.5
        %v551 = vmul.f32 %v522, 0.5
        %v552 = vmul.f32 %v525, 0.5
        %v553 = vmul.f32 %v530, 0.5
        %v554 = vtanh.pop %v535
        %v555 = vtanh.pop %v536
        %v556 = vtanh.pop %v537
        %v557 = vtanh.pop %v538
        %v558 = vtanh.pop %v539
        %v559 = vtanh.pop %v540
        %v560 = vtanh.pop %v541
        %v561 = vtanh.pop %v542
        %v562 = vtanh.pop %v543
        %v563 = vtanh.pop %v544
        %v564 = vtanh.pop %v545
        %v565 = vtanh.pop %v546
        %v566 = vtanh.pop %v547
        %v567 = vtanh.pop %v548
        %v568 = vtanh.pop %v549
        %v569 = vtanh.pop %v550
        %v570 = vtanh.pop %v551
        %v571 = vtanh.pop %v552
        %v572 = vtanh.pop %v553
        %v573 = vmul.f32 %v554, 0.5
        %v574 = vmul.f32 %v555, 0.5
        %v575 = vmul.f32 %v556, 0.5
        %v576 = vmul.f32 %v557, 0.5
        %v577 = vmul.f32 %v558, 0.5
        %v578 = vmul.f32 %v559, 0.5
        %v579 = vmul.f32 %v560, 0.5
        %v580 = vmul.f32 %v561, 0.5
        %v581 = vmul.f32 %v562, 0.5
        %v582 = vmul.f32 %v563, 0.5
        %v583 = vmul.f32 %v564, 0.5
        %v584 = vmul.f32 %v565, 0.5
        %v585 = vmul.f32 %v566, 0.5
        %v586 = vmul.f32 %v567, 0.5
        %v587 = vmul.f32 %v568, 0.5
        %v588 = vmul.f32 %v569, 0.5
        %v589 = vmul.f32 %v570, 0.5
        %v590 = vmul.f32 %v571, 0.5
        %v591 = vmul.f32 %v572, 0.5
        %v592 = vadd.f32 %v573, 0.5
        %v593 = vadd.f32 %v574, 0.5
        %v594 = vadd.f32 %v575, 0.5
        %v595 = vadd.f32 %v576, 0.5
        %v596 = vadd.f32 %v577, 0.5
        %v597 = vadd.f32 %v578, 0.5
        %v598 = vadd.f32 %v579, 0.5
        %v599 = vadd.f32 %v580, 0.5
        %v600 = vadd.f32 %v581, 0.5
        %v601 = vadd.f32 %v582, 0.5
        %v602 = vadd.f32 %v583, 0.5
        %v603 = vadd.f32 %v584, 0.5
        %v604 = vadd.f32 %v585, 0.5
        %v605 = vadd.f32 %v586, 0.5
        %v606 = vadd.f32 %v587, 0.5
        %v607 = vadd.f32 %v588, 0.5
        %v608 = vadd.f32 %v589, 0.5
        %v609 = vadd.f32 %v590, 0.5
        %v610 = vadd.f32 %v591, 0.5
        %v611 = vpack.c.bf16 %v593, %v592
        %v612 = vpack.c.bf16 %v595, %v594
        %v613 = vpack.c.bf16 %v597, %v596
        %v614 = vpack.c.bf16 %v599, %v598
        %v615 = vpack.c.bf16 %v601, %v600
        %v616 = vpack.c.bf16 %v603, %v602
        %v617 = vpack.c.bf16 %v605, %v604
        %v618 = vpack.c.bf16 %v607, %v606
        %v619 = vpack.c.bf16 %v609, %v608
        %v620 = vpack.c.bf16 %v610, %v610
        %v621 = vld [vmem:[#allocation7] sm:$0xf]
        %v622 = vld [vmem:[#allocation7 + $0x4] sm:$0xf]
        %v623 = vld [vmem:[#allocation7 + $0x8] sm:$0xf]
        %v624 = vld [vmem:[#allocation7 + $0xc] sm:$0xf]
        %v625 = vld [vmem:[#allocation7 + $0x10] sm:$0xf]
        %v626 = vld [vmem:[#allocation7 + $0x14] sm:$0xf]
        %v627 = vld [vmem:[#allocation7 + $0x18] sm:$0xf]
        %v628 = vld [vmem:[#allocation7 + $0x1c] sm:$0xf]
        %v629 = vld [vmem:[#allocation7 + $0x20] sm:$0xf]
        %v630 = vld [vmem:[#allocation7 + $0x24] sm:$0xf]
        %v631 = vld [vmem:[#allocation7 + $0x28] sm:$0xf]
        %v632 = vld [vmem:[#allocation7 + $0x2c] sm:$0xf]
        %v633 = vld [vmem:[#allocation7 + $0x30] sm:$0xf]
        %v634 = vld [vmem:[#allocation7 + $0x34] sm:$0xf]
        %v635 = vld [vmem:[#allocation7 + $0x38] sm:$0xf]
        %v636 = vld [vmem:[#allocation7 + $0x3c] sm:$0xf]
        %v637 = vld [vmem:[%s4] sm:$0x1]
        %v639 = vlaneseq
        %v640 = vshrl.u32 %v639, 7
        %v641 = vsub.s32 0, %v640
        %v642 = vrot.slane %v637, %v641
        %v660 = vunpack.c.l.b16 %v621
        %v661 = vunpack.c.l.b16 %v622
        %v662 = vunpack.c.l.b16 %v623
        %v663 = vunpack.c.l.b16 %v624
        %v664 = vunpack.c.l.b16 %v625
        %v665 = vunpack.c.l.b16 %v626
        %v666 = vunpack.c.l.b16 %v627
        %v667 = vunpack.c.l.b16 %v628
        %v668 = vunpack.c.l.b16 %v629
        %v669 = vunpack.c.l.b16 %v630
        %v670 = vunpack.c.l.b16 %v631
        %v671 = vunpack.c.l.b16 %v632
        %v672 = vunpack.c.l.b16 %v633
        %v673 = vunpack.c.l.b16 %v634
        %v674 = vunpack.c.l.b16 %v635
        %v675 = vunpack.c.l.b16 %v636
        %v676 = vpack.c.b16 %v661, %v660
        %v677 = vpack.c.b16 %v663, %v662
        %v678 = vpack.c.b16 %v665, %v664
        %v679 = vpack.c.b16 %v667, %v666
        %v680 = vpack.c.b16 %v669, %v668
        %v681 = vpack.c.b16 %v671, %v670
        %v682 = vpack.c.b16 %v673, %v672
        %v683 = vpack.c.b16 %v675, %v674
        %692 = vmatprep.subr.bf16.mxu0 0
        %693 = vmatpush1.bf16.msra.mxu0 %v676
        %694 = vmatprep.subr.bf16.mxu0 0
        %695 = vmatpush1.bf16.msra.mxu0 %v677
        %696 = vmatprep.subr.bf16.mxu0 0
        %697 = vmatpush1.bf16.msra.mxu0 %v678
        %698 = vmatprep.subr.bf16.mxu0 0
        %699 = vmatpush1.bf16.msra.mxu0 %v679
        %700 = vmatprep.subr.bf16.mxu0 0
        %701 = vmatpush1.bf16.msra.mxu0 %v680
        %702 = vmatprep.subr.bf16.mxu0 0
        %703 = vmatpush1.bf16.msra.mxu0 %v681
        %704 = vmatprep.subr.bf16.mxu0 0
        %705 = vmatpush1.bf16.msra.mxu0 %v682
        %706 = vmatprep.subr.bf16.mxu0 0
        %707 = vmatpush1.bf16.msra.mxu0 %v683
        %708 = vmatprep.subr.bf16.mxu0 0
        %709 = vmatpush1.bf16.msra.mxu0 0
        %710 = vmatprep.subr.bf16.mxu0 0
        %711 = vmatpush1.bf16.msra.mxu0 0
        %712 = vmatprep.subr.bf16.mxu0 0
        %713 = vmatpush1.bf16.msra.mxu0 0
        %714 = vmatprep.subr.bf16.mxu0 0
        %715 = vmatpush1.bf16.msra.mxu0 0
        %716 = vmatprep.subr.bf16.mxu0 0
        %717 = vmatpush1.bf16.msra.mxu0 0
        %718 = vmatprep.subr.bf16.mxu0 0
        %719 = vmatpush1.bf16.msra.mxu0 0
        %720 = vmatprep.subr.bf16.mxu0 0
        %721 = vmatpush1.bf16.msra.mxu0 0
        %722 = vmatprep.subr.bf16.mxu0 0
        %723 = vmatpush1.bf16.msra.mxu0 0
        %724 = vmatprep.mubr.bf16.mxu0 0
        %725 = vmatmul.mubr.bf16.gmra.mrb[0].mxu0 %v611
        %v726 = vpop.f32.mrb[0].mxu0
        %v727 = vadd.f32 %v642, %v726
        %v728 = vpop.f32.mrb[0].mxu0
        %v729 = vpop.f32.mrb[0].mxu0
        %v730 = vadd.f32 %v642, %v729
        %v731 = vpop.f32.mrb[0].mxu0
        %732 = vmatprep.mubr.bf16.mxu0 0
        %733 = vmatmul.mubr.bf16.gmra.mrb[0].mxu0 %v612
        %v734 = vpop.f32.mrb[0].mxu0
        %v735 = vadd.f32 %v642, %v734
        %v736 = vpop.f32.mrb[0].mxu0
        %v737 = vpop.f32.mrb[0].mxu0
        %v738 = vadd.f32 %v642, %v737
        %v739 = vpop.f32.mrb[0].mxu0
        %740 = vmatprep.mubr.bf16.mxu0 0
        %741 = vmatmul.mubr.bf16.gmra.mrb[0].mxu0 %v613
        %v742 = vpop.f32.mrb[0].mxu0
        %v743 = vadd.f32 %v642, %v742
        %v744 = vpop.f32.mrb[0].mxu0
        %v745 = vpop.f32.mrb[0].mxu0
        %v746 = vadd.f32 %v642, %v745
        %v747 = vpop.f32.mrb[0].mxu0
        %748 = vmatprep.mubr.bf16.mxu0 0
        %749 = vmatmul.mubr.bf16.gmra.mrb[0].mxu0 %v614
        %v750 = vpop.f32.mrb[0].mxu0
        %v751 = vadd.f32 %v642, %v750
        %v752 = vpop.f32.mrb[0].mxu0
        %v753 = vpop.f32.mrb[0].mxu0
        %v754 = vadd.f32 %v642, %v753
        %v755 = vpop.f32.mrb[0].mxu0
        %756 = vmatprep.mubr.bf16.mxu0 0
        %757 = vmatmul.mubr.bf16.gmra.mrb[0].mxu0 %v615
        %v758 = vpop.f32.mrb[0].mxu0
        %v759 = vadd.f32 %v642, %v758
        %v760 = vpop.f32.mrb[0].mxu0
        %v761 = vpop.f32.mrb[0].mxu0
        %v762 = vadd.f32 %v642, %v761
        %v763 = vpop.f32.mrb[0].mxu0
        %764 = vmatprep.mubr.bf16.mxu0 0
        %765 = vmatmul.mubr.bf16.gmra.mrb[0].mxu0 %v616
        %v766 = vpop.f32.mrb[0].mxu0
        %v767 = vadd.f32 %v642, %v766
        %v768 = vpop.f32.mrb[0].mxu0
        %v769 = vpop.f32.mrb[0].mxu0
        %v770 = vadd.f32 %v642, %v769
        %v771 = vpop.f32.mrb[0].mxu0
        %772 = vmatprep.mubr.bf16.mxu0 0
        %773 = vmatmul.mubr.bf16.gmra.mrb[0].mxu0 %v617
        %v774 = vpop.f32.mrb[0].mxu0
        %v775 = vadd.f32 %v642, %v774
        %v776 = vpop.f32.mrb[0].mxu0
        %v777 = vpop.f32.mrb[0].mxu0
        %v778 = vadd.f32 %v642, %v777
        %v779 = vpop.f32.mrb[0].mxu0
        %780 = vmatprep.mubr.bf16.mxu0 0
        %781 = vmatmul.mubr.bf16.gmra.mrb[0].mxu0 %v618
        %v782 = vpop.f32.mrb[0].mxu0
        %v783 = vadd.f32 %v642, %v782
        %v784 = vpop.f32.mrb[0].mxu0
        %v785 = vpop.f32.mrb[0].mxu0
        %v786 = vadd.f32 %v642, %v785
        %v787 = vpop.f32.mrb[0].mxu0
        %788 = vmatprep.mubr.bf16.mxu0 0
        %789 = vmatmul.mubr.bf16.gmra.mrb[0].mxu0 %v619
        %v790 = vpop.f32.mrb[0].mxu0
        %v791 = vadd.f32 %v642, %v790
        %v792 = vpop.f32.mrb[0].mxu0
        %v793 = vpop.f32.mrb[0].mxu0
        %v794 = vadd.f32 %v642, %v793
        %v795 = vpop.f32.mrb[0].mxu0
        %796 = vmatprep.mubr.bf16.mxu0 0
        %797 = vmatmul.mubr.bf16.gmra.mrb[0].mxu0 %v620
        %v798 = vpop.f32.mrb[0].mxu0
        %v799 = vadd.f32 %v642, %v798
        %v800 = vpop.f32.mrb[0].mxu0
        %v801 = vpop.f32.mrb[0].mxu0
        %v802 = vpop.f32.mrb[0].mxu0
        %803 = vdwg.mxu0
        %v804 = vmul.f32 %v727, 0.5
        %v805 = vmul.f32 %v730, 0.5
        %v806 = vmul.f32 %v735, 0.5
        %v807 = vmul.f32 %v738, 0.5
        %v808 = vmul.f32 %v743, 0.5
        %v809 = vmul.f32 %v746, 0.5
        %v810 = vmul.f32 %v751, 0.5
        %v811 = vmul.f32 %v754, 0.5
        %v812 = vmul.f32 %v759, 0.5
        %v813 = vmul.f32 %v762, 0.5
        %v814 = vmul.f32 %v767, 0.5
        %v815 = vmul.f32 %v770, 0.5
        %v816 = vmul.f32 %v775, 0.5
        %v817 = vmul.f32 %v778, 0.5
        %v818 = vmul.f32 %v783, 0.5
        %v819 = vmul.f32 %v786, 0.5
        %v820 = vmul.f32 %v791, 0.5
        %v821 = vmul.f32 %v794, 0.5
        %v822 = vmul.f32 %v799, 0.5
        %v823 = vtanh.pop %v804
        %v824 = vtanh.pop %v805
        %v825 = vtanh.pop %v806
        %v826 = vtanh.pop %v807
        %v827 = vtanh.pop %v808
        %v828 = vtanh.pop %v809
        %v829 = vtanh.pop %v810
        %v830 = vtanh.pop %v811
        %v831 = vtanh.pop %v812
        %v832 = vtanh.pop %v813
        %v833 = vtanh.pop %v814
        %v834 = vtanh.pop %v815
        %v835 = vtanh.pop %v816
        %v836 = vtanh.pop %v817
        %v837 = vtanh.pop %v818
        %v838 = vtanh.pop %v819
        %v839 = vtanh.pop %v820
        %v840 = vtanh.pop %v821
        %v841 = vtanh.pop %v822
        %v842 = vmul.f32 %v823, 0.5
        %v843 = vmul.f32 %v824, 0.5
        %v844 = vmul.f32 %v825, 0.5
        %v845 = vmul.f32 %v826, 0.5
        %v846 = vmul.f32 %v827, 0.5
        %v847 = vmul.f32 %v828, 0.5
        %v848 = vmul.f32 %v829, 0.5
        %v849 = vmul.f32 %v830, 0.5
        %v850 = vmul.f32 %v831, 0.5
        %v851 = vmul.f32 %v832, 0.5
        %v852 = vmul.f32 %v833, 0.5
        %v853 = vmul.f32 %v834, 0.5
        %v854 = vmul.f32 %v835, 0.5
        %v855 = vmul.f32 %v836, 0.5
        %v856 = vmul.f32 %v837, 0.5
        %v857 = vmul.f32 %v838, 0.5
        %v858 = vmul.f32 %v839, 0.5
        %v859 = vmul.f32 %v840, 0.5
        %v860 = vmul.f32 %v841, 0.5
        %v861 = vadd.f32 %v842, 0.5
        %v862 = vadd.f32 %v843, 0.5
        %v863 = vadd.f32 %v844, 0.5
        %v864 = vadd.f32 %v845, 0.5
        %v865 = vadd.f32 %v846, 0.5
        %v866 = vadd.f32 %v847, 0.5
        %v867 = vadd.f32 %v848, 0.5
        %v868 = vadd.f32 %v849, 0.5
        %v869 = vadd.f32 %v850, 0.5
        %v870 = vadd.f32 %v851, 0.5
        %v871 = vadd.f32 %v852, 0.5
        %v872 = vadd.f32 %v853, 0.5
        %v873 = vadd.f32 %v854, 0.5
        %v874 = vadd.f32 %v855, 0.5
        %v875 = vadd.f32 %v856, 0.5
        %v876 = vadd.f32 %v857, 0.5
        %v877 = vadd.f32 %v858, 0.5
        %v878 = vadd.f32 %v859, 0.5
        %v879 = vadd.f32 %v860, 0.5
        %880 = vst [vmem:[%s271] sm:$0xff] %v861
        %881 = vst [vmem:[%s271 + $0x8] sm:$0xff] %v862
        %882 = vst [vmem:[%s271 + $0x10] sm:$0xff] %v863
        %883 = vst [vmem:[%s271 + $0x18] sm:$0xff] %v864
        %884 = vst [vmem:[%s271 + $0x20] sm:$0xff] %v865
        %885 = vst [vmem:[%s271 + $0x28] sm:$0xff] %v866
        %886 = vst [vmem:[%s271 + $0x30] sm:$0xff] %v867
        %887 = vst [vmem:[%s271 + $0x38] sm:$0xff] %v868
        %888 = vst [vmem:[%s271 + $0x40] sm:$0xff] %v869
        %889 = vst [vmem:[%s271 + $0x48] sm:$0xff] %v870
        %890 = vst [vmem:[%s271 + $0x50] sm:$0xff] %v871
        %891 = vst [vmem:[%s271 + $0x58] sm:$0xff] %v872
        %892 = vst [vmem:[%s271 + $0x60] sm:$0xff] %v873
        %893 = vst [vmem:[%s271 + $0x68] sm:$0xff] %v874
        %894 = vst [vmem:[%s271 + $0x70] sm:$0xff] %v875
        %895 = vst [vmem:[%s271 + $0x78] sm:$0xff] %v876
        %896 = vst [vmem:[%s271 + $0x80] sm:$0xff] %v877
        %897 = vst [vmem:[%s271 + $0x88] sm:$0xff] %v878
        %898 = vst [vmem:[%s271 + $0x90] sm:$0xff] %v879
        %s899 = sand.u32 %s141, 1
        %s900 = scalar_lea.sflag [#allocation4], %s899
        %s901 = sand.u32 %s141, 1
        %s902 = smul.addr %s901, 152
        %s903 = scalar_lea.vmem [#allocation8], %s902
        // Predicated region
        $region53: #{tpu_custom_call.1} parent=39 // pred_check
          %p904 = pneg %p151
        $region54: #{tpu_custom_call.1} parent=39 // pred_check_branch
          %906 = sbr.rel (%p904) target = $region56
        $region55: #{tpu_custom_call.1} parent=39 // pred_region
          %s907 = smul.u32 19, %s23
          %s909 = ssub.s32 2432, 2432
          %910 = vsyncadd %s900, %s909
          %s911 = smul.addr %s907, 128
          %s912 = scalar_lea.hbm %s5, %s911
          %s913 = sshll.u32 %s903, 4
          %s914 = int_to_ptr.vmem [resolvable:$true] %s913
          %919 = dma.vmem_to_hbm [thread:$0]  %s914, 2432, %s912, %s900, 128, 128, 8
        $region56: #{tpu_custom_call.1} parent=39 // pred_fallthru
          _
      $region40: #{tpu_custom_call.1} parent=5 // pred_fallthru
        _
      %p920 = scmp.le.s32.totalorder 2, %s18
      // Predicated region
      $region57: #{tpu_custom_call.1} parent=5 // pred_check
        %p921 = pneg %p920
      $region58: #{tpu_custom_call.1} parent=5 // pred_check_branch
        %923 = sbr.rel (%p921) target = $region60
      $region59: #{tpu_custom_call.1} parent=5 // pred_region
        %s924 = ssub.s32 %s18, 2
        // Predicated region
        $region61: #{tpu_custom_call.1} parent=59 // pred_check
          %p925 = pneg %p157
        $region62: #{tpu_custom_call.1} parent=59 // pred_check_branch
          %927 = sbr.rel (%p925) target = $region64
        $region63: #{tpu_custom_call.1} parent=59 // pred_region
          %s928 = sand.u32 %s142, 1
          %s929 = scalar_lea.sflag [#allocation4], %s928
          %s930 = sand.u32 %s142, 1
          %s931 = smul.addr %s930, 152
          %s932 = scalar_lea.vmem [#allocation8], %s931
          %933 = dma.done %s929, 2432
        $region64: #{tpu_custom_call.1} parent=59 // pred_fallthru
          _
      $region60: #{tpu_custom_call.1} parent=5 // pred_fallthru
        _
    $region6: #{tpu_custom_call.1} parent=1 // loop_footer
      %s22 = sadd.s32 1, %s18
    $region7: #{tpu_custom_call.1} parent=1 // loop_footer_branch
      %17 = sbr.rel target = $region3
    $region8: #{tpu_custom_call.1} parent=1 // loop_exit
      _
    %934 = vsyncpa [#allocation3], 1
    %s935 = scalar_lea.sflag [#allocation3], 1
    %936 = vsyncpa %s935, 1
    %937 = vsyncpa [#allocation6], 1
    %938 = vsyncpa [#allocation4], 1
    %s939 = scalar_lea.sflag [#allocation4], 1
    %940 = vsyncpa %s939, 1

</llo_original>
